<compile_context>
chip_gen: v7x
topology: tpu7x:2x2x1
jax: 0.10.0
libtpu: 0.0.40
codegen_flags: <defaults>
</compile_context>

<pallas_src>
import math
from functools import partial

import jax
import jax.numpy as jnp
from jax.experimental import pallas as pl
from jax.experimental.pallas import tpu as pltpu


def _round_up(x: int, m: int) -> int:
    return ((x + m - 1) // m) * m


def _embed_kernel_blockdiag(idx_ref, w_ref, o_ref, *, c_in: int):
    # idx_ref: (TM, k) int32
    # w_ref:   (k*c_in, k*d_model)  block-diagonal table
    # o_ref:   (TM, k*d_model)      lane-dense gathered rows (f32)
    tm, k = idx_ref.shape
    kc = w_ref.shape[0]
    idx = jnp.clip(idx_ref[...], 0, c_in - 1)                 # in-kernel clamp (VPU)
    cols = jax.lax.broadcasted_iota(jnp.int32, (tm, kc), 1)
    hit = None
    for j in range(k):                                        # k is tiny & static
        mj = cols == (idx[:, j:j + 1] + j * c_in)
        hit = mj if hit is None else jnp.logical_or(hit, mj)
    onehot = hit.astype(w_ref.dtype)
    # one-hot @ block_diag(W,...,W) == per-block gather; one MXU pass, 128-lane store.
    o_ref[...] = jnp.dot(onehot, w_ref[...], preferred_element_type=jnp.float32)


def _embed_kernel_shared(idx_ref, w_ref, o_ref, *, c_in: int, d_model: int):
    # Large-vocab path: k matmuls against the shared (c_in, d_model) table; each
    # result lands in its own d_model-wide lane slice of the 128-lane output block.
    tm, k = idx_ref.shape
    idx = jnp.clip(idx_ref[...], 0, c_in - 1)
    cols = jax.lax.broadcasted_iota(jnp.int32, (tm, c_in), 1)
    w = w_ref[...]
    for j in range(k):
        onehot = (cols == idx[:, j:j + 1]).astype(w.dtype)
        o_ref[:, j * d_model:(j + 1) * d_model] = jnp.dot(
            onehot, w, preferred_element_type=jnp.float32)


def fixed_embedding_table(c_in: int, d_model: int) -> jnp.ndarray:
    """Deterministic sinusoidal table, identical to the PyTorch __init__."""
    position = jnp.arange(c_in, dtype=jnp.float32)[:, None]
    div_term = jnp.exp(
        jnp.arange(0, d_model, 2, dtype=jnp.float32)
        * -(math.log(10000.0) / d_model))
    w = jnp.zeros((c_in, d_model), jnp.float32)
    w = w.at[:, 0::2].set(jnp.sin(position * div_term))
    w = w.at[:, 1::2].set(jnp.cos(position * div_term))
    return w


def fixed_embedding(x: jnp.ndarray, w: jnp.ndarray, *, tile_rows: int = 2048,
                    table_dtype=jnp.float32) -> jnp.ndarray:
    """Forward pass: w[x], returns x.shape + (d_model,) float32.

    tile_rows counts *packed* output rows (each covers k = 128/d_model original
    rows when lane-packing applies).  Sweep 2048-4096 per generation.
    Out-of-range indices are clamped (nn.Embedding would raise).
    """
    c_in, d_model = w.shape
    orig_shape = x.shape
    idx = x.reshape(-1)
    if idx.dtype != jnp.int32:
        idx = idx.astype(jnp.int32)
    n = int(idx.shape[0])

    # Lane-packing factor: fold k rows into one 128-lane-wide output row.
    if d_model < 128 and 128 % d_model == 0:
        k = 128 // d_model
    else:
        k = 1
        # TODO(synk): d_model that neither reaches nor divides 128 falls back to
        # masked sub-128-lane stores; pad the table columns to a divisor of 128 if
        # the consumer can accept padded width.

    pad = (-n) % k                       # < k elements; only when n % k != 0
    if pad:
        idx = jnp.pad(idx, (0, pad))     # padded rows gather row 0, sliced off below
    m = (n + pad) // k
    idx2 = idx.reshape(m, k)             # (m, k) packed indices
    # NOTE: a lane-dense (k, m) index layout + in-kernel XLU transpose would shrink
    # the index DMA further (~5-15% on v7x); kept sublane-oriented here for robustness.

    # Tile selection: as big as possible, but keep >= 2 grid steps (v7x megacore)
    # and never round m up to a tile multiple (ragged last block is masked by Pallas).
    if m < 8:
        tile_m = m                                           # single full-dim block
    else:
        tile_m = min(_round_up(tile_rows, 8), (m // 8) * 8)
        if pl.cdiv(m, tile_m) < 2 and m >= 16:
            tile_m = max(8, ((m // 2) // 8) * 8)             # split so both TCs work
    grid = (pl.cdiv(m, tile_m),)

    kd = k * d_model
    w_cast = w.astype(table_dtype)       # bf16 opt-in (v5e); f32 default is exact

    use_blockdiag = (k > 1) and (k * c_in <= 1024)
    if use_blockdiag:
        kc = k * c_in
        w_arg = jnp.zeros((kc, kd), table_dtype)
        for j in range(k):
            w_arg = w_arg.at[j * c_in:(j + 1) * c_in,
                             j * d_model:(j + 1) * d_model].set(w_cast)
        kernel = partial(_embed_kernel_blockdiag, c_in=c_in)
        flops = 2 * m * kc * kd
    else:
        w_arg = w_cast
        kernel = partial(_embed_kernel_shared, c_in=c_in, d_model=d_model)
        flops = 2 * m * k * c_in * d_model

    table_bytes = w_arg.shape[0] * w_arg.shape[1] * w_arg.dtype.itemsize

    out = pl.pallas_call(
        kernel,
        out_shape=jax.ShapeDtypeStruct((m, kd), jnp.float32),
        grid=grid,
        in_specs=[
            pl.BlockSpec((tile_m, k), lambda i: (i, 0)),          # packed index tile
            pl.BlockSpec(w_arg.shape, lambda i: (0, 0)),          # resident table
        ],
        out_specs=pl.BlockSpec((tile_m, kd), lambda i: (i, 0)),
        compiler_params=pltpu.CompilerParams(
            dimension_semantics=("parallel",),                    # shardable on v7x 2 TCs
        ),
        cost_estimate=pl.CostEstimate(
            flops=flops,
            transcendentals=0,
            bytes_accessed=m * k * 4 + table_bytes + m * kd * 4,
        ),
    )(idx2, w_arg)

    # Row-major reshape: packed (m, k*d_model) -> (m*k, d_model) is free; the slice
    # only exists (and only copies < k extra rows' worth) when n % k != 0.
    out_flat = out.reshape(m * k, d_model)
    if pad:
        out_flat = out_flat[:n]
    return out_flat.reshape(*orig_shape, d_model)


if __name__ == "__main__":
    c_in, d_model = 16, 32          # small temporal vocabulary (Informer-style use)
    w = fixed_embedding_table(c_in, d_model)
    key = jax.random.PRNGKey(0)

    # Small shape consistent with the module: batch of index sequences.
    B, L = 2, 8
    x_small = jax.random.randint(key, (B, L), 0, c_in, dtype=jnp.int32)
    y_small = jax.block_until_ready(fixed_embedding(x_small, w))
    ref_small = jnp.take(w, x_small, axis=0)
    assert y_small.shape == (B, L, d_model)
    assert jnp.allclose(y_small, ref_small, atol=1e-6), "mismatch (small)"

    # Larger shape: multi-step grid (>= 2 steps for megacore), lane-packed path.
    x_big = jax.random.randint(jax.random.PRNGKey(1), (8, 384), 0, c_in, dtype=jnp.int32)
    y_big = jax.block_until_ready(fixed_embedding(x_big, w))
    assert y_big.shape == (8, 384, d_model)
    assert jnp.allclose(y_big, jnp.take(w, x_big, axis=0), atol=1e-6), "mismatch (big)"

    # Ragged count: N not a multiple of the packing factor (exercises pad/slice tail).
    x_odd = jax.random.randint(jax.random.PRNGKey(2), (3, 7), 0, c_in, dtype=jnp.int32)
    y_odd = jax.block_until_ready(fixed_embedding(x_odd, w))
    assert y_odd.shape == (3, 7, d_model)
    assert jnp.allclose(y_odd, jnp.take(w, x_odd, axis=0), atol=1e-6), "mismatch (odd)"

    # Large vocabulary: exercises the shared-table (no block-diagonal) kernel path.
    c_big = 600
    w_big = fixed_embedding_table(c_big, d_model)
    x_voc = jax.random.randint(jax.random.PRNGKey(3), (4, 64), 0, c_big, dtype=jnp.int32)
    y_voc = jax.block_until_ready(fixed_embedding(x_voc, w_big))
    assert jnp.allclose(y_voc, jnp.take(w_big, x_voc, axis=0), atol=1e-6), "mismatch (vocab)"

    print("KERNEL_OK")
</pallas_src>

<mosaic_0001>
module attributes {stable_mosaic.version = 11 : i64} {
  func.func @_embed_kernel_blockdiag(%arg0: i32, %arg1: memref<4x4xi32, #tpu.memory_space<vmem>>, %arg2: memref<64x128xf32, #tpu.memory_space<vmem>>, %arg3: memref<4x128xf32, #tpu.memory_space<vmem>>) attributes {dimension_semantics = [#tpu.dimension_semantics<parallel>], iteration_bounds = array<i64: 1>, scalar_prefetch = 0 : i64, scratch_operands = 0 : i64, tpu.core_type = #tpu.core_type<tc>, window_params = [{transform_indices = @transform_0, window_bounds = array<i64: 4, 4>}, {pipeline_mode = #tpu.pipeline_mode<synchronous>, transform_indices = @transform_1, window_bounds = array<i64: 64, 128>}, {transform_indices = @transform_2, window_bounds = array<i64: 4, 128>}]} {
    %c0 = arith.constant 0 : index
    %c0_0 = arith.constant 0 : index
    %0 = vector.load %arg1[%c0, %c0_0] : memref<4x4xi32, #tpu.memory_space<vmem>>, vector<4x4xi32>
    %c0_i32 = arith.constant 0 : i32
    %c15_i32 = arith.constant 15 : i32
    %1 = vector.broadcast %c0_i32 : i32 to vector<4x4xi32>
    %2 = arith.maxsi %1, %0 : vector<4x4xi32>
    %3 = vector.broadcast %c15_i32 : i32 to vector<4x4xi32>
    %4 = arith.minsi %3, %2 : vector<4x4xi32>
    %5 = tpu.iota {dimensions = array<i32: 1>} : vector<4x64xi32>
    %6 = vector.extract_strided_slice %4 {offsets = [0, 0], sizes = [4, 1], strides = [1, 1]} : vector<4x4xi32> to vector<4x1xi32>
    %c0_i32_1 = arith.constant 0 : i32
    %7 = vector.broadcast %c0_i32_1 : i32 to vector<4x1xi32>
    %8 = arith.addi %6, %7 : vector<4x1xi32>
    %9 = vector.broadcast %8 : vector<4x1xi32> to vector<4x64xi32>
    %10 = arith.cmpi eq, %5, %9 : vector<4x64xi32>
    %11 = vector.extract_strided_slice %4 {offsets = [0, 1], sizes = [4, 1], strides = [1, 1]} : vector<4x4xi32> to vector<4x1xi32>
    %c16_i32 = arith.constant 16 : i32
    %12 = vector.broadcast %c16_i32 : i32 to vector<4x1xi32>
    %13 = arith.addi %11, %12 : vector<4x1xi32>
    %14 = vector.broadcast %13 : vector<4x1xi32> to vector<4x64xi32>
    %15 = arith.cmpi eq, %5, %14 : vector<4x64xi32>
    %16 = arith.ori %10, %15 : vector<4x64xi1>
    %17 = vector.extract_strided_slice %4 {offsets = [0, 2], sizes = [4, 1], strides = [1, 1]} : vector<4x4xi32> to vector<4x1xi32>
    %c32_i32 = arith.constant 32 : i32
    %18 = vector.broadcast %c32_i32 : i32 to vector<4x1xi32>
    %19 = arith.addi %17, %18 : vector<4x1xi32>
    %20 = vector.broadcast %19 : vector<4x1xi32> to vector<4x64xi32>
    %21 = arith.cmpi eq, %5, %20 : vector<4x64xi32>
    %22 = arith.ori %16, %21 : vector<4x64xi1>
    %23 = vector.extract_strided_slice %4 {offsets = [0, 3], sizes = [4, 1], strides = [1, 1]} : vector<4x4xi32> to vector<4x1xi32>
    %c48_i32 = arith.constant 48 : i32
    %24 = vector.broadcast %c48_i32 : i32 to vector<4x1xi32>
    %25 = arith.addi %23, %24 : vector<4x1xi32>
    %26 = vector.broadcast %25 : vector<4x1xi32> to vector<4x64xi32>
    %27 = arith.cmpi eq, %5, %26 : vector<4x64xi32>
    %28 = arith.ori %22, %27 : vector<4x64xi1>
    %29 = arith.extui %28 : vector<4x64xi1> to vector<4x64xi32>
    %30 = arith.sitofp %29 : vector<4x64xi32> to vector<4x64xf32>
    %c0_2 = arith.constant 0 : index
    %c0_3 = arith.constant 0 : index
    %31 = vector.load %arg2[%c0_2, %c0_3] : memref<64x128xf32, #tpu.memory_space<vmem>>, vector<64x128xf32>
    %cst = arith.constant dense<0.000000e+00> : vector<4x128xf32>
    %32 = tpu.matmul %30, %31, %cst {dimension_numbers = #tpu.dot_dimension_numbers<[1], [0], [0], [1], [0, 0, 1, 1], [], []>} : vector<4x64xf32>, vector<64x128xf32>, vector<4x128xf32> -> vector<4x128xf32>
    %c0_4 = arith.constant 0 : index
    %c0_5 = arith.constant 0 : index
    %33 = vector.load %arg3[%c0_4, %c0_5] : memref<4x128xf32, #tpu.memory_space<vmem>>, vector<4x128xf32>
    tpu.vector_store %arg3[%c0_4, %c0_5], %32 {strides = array<i32>} : memref<4x128xf32, #tpu.memory_space<vmem>>, vector<4x128xf32>,
    return
  }
  func.func @transform_0(%arg0: i32) -> (i32, i32) {
    %c0_i32 = arith.constant 0 : i32
    %c0_i32_0 = arith.constant 0 : i32
    return %arg0, %c0_i32 : i32, i32
  }
  func.func @transform_1(%arg0: i32) -> (i32, i32) {
    %c0_i32 = arith.constant 0 : i32
    %c0_i32_0 = arith.constant 0 : i32
    %c0_i32_1 = arith.constant 0 : i32
    return %c0_i32, %c0_i32_0 : i32, i32
  }
  func.func @transform_2(%arg0: i32) -> (i32, i32) {
    %c0_i32 = arith.constant 0 : i32
    %c0_i32_0 = arith.constant 0 : i32
    return %arg0, %c0_i32 : i32, i32
  }
}

</mosaic_0001>

<llo_original>
// kernel: tpu_custom_call.1
$region0: #{tpu_custom_call.1}
  #allocation0 [shape = 'u32[]', space=smem, size = 0x4, offset = 0x4, fixed_abs, tag = 'smem constant byte address 0x4 - core index']
  #allocation1 [shape = 'u32[144,128]{1,0:T(1,128)}', space=vmem, size = 0x12000, scoped, tag = 'internal scratch']
  %s0 = inlined_call_operand.hbm [shape: s32[4,4], index: 0, kind: input, shape index: {}]
  %s1 = inlined_call_operand.hbm [shape: f32[64,128], index: 1, kind: input, shape index: {}]
  %s2 = inlined_call_operand.hbm [shape: f32[4,128], index: 2, kind: output, shape index: {}]
  %s3 = sld [smem:[#allocation0]]
  $region26: #{tpu_custom_call.1} parent=0
    _
  %s5 = ssub.s32 1, %s3
  %s6 = scalar_select 0, %s5, %s3
  $region1: #{tpu_custom_call.1} parent=0
    #allocation2 [shape = 'u8[2048]{0}', space=vmem, size = 0x800, scoped, tag = 'input window, operand 0, single buffered']
    #allocation3 [shape = 's32[1]{0}', space=sflag, size = 0x4, scoped, tag = 'scoped memory for tpu_custom_call.1']
    #allocation4 [shape = 's32[1]{0}', space=sflag, size = 0x4, scoped, tag = 'scoped memory for tpu_custom_call.1']
    #allocation5 [shape = 'u8[32768]{0}', space=vmem, size = 0x8000, scoped, tag = 'input window, operand 1, single buffered']
    #allocation6 [shape = 's32[1]{0}', space=sflag, size = 0x4, scoped, tag = 'scoped memory for tpu_custom_call.1']
    #allocation7 [shape = 'u8[2048]{0}', space=vmem, size = 0x800, scoped, tag = 'output window, operand 0, single buffered']
    %7 = vsyncpa [#allocation3], 0
    %8 = vsyncpa [#allocation6], 0
    %9 = vsyncpa [#allocation4], 0
    // Predicated region
    $region2: #{tpu_custom_call.1} parent=1 // pred_check
      _
    $region3: #{tpu_custom_call.1} parent=1 // pred_check_branch
      %11 = sbr.rel (0) target = $region5
    $region4: #{tpu_custom_call.1} parent=1 // pred_region
      %s13 = ssub.s32 64, 64
      %14 = vsyncadd [#allocation3], %s13
      %s16 = sshll.u32 [#allocation2], 4
      %s17 = int_to_ptr.vmem [resolvable:$true] %s16
      %19 = dma.hbm_to_vmem [thread:$0]  %s0, 64, %s17, [#allocation3]
    $region5: #{tpu_custom_call.1} parent=1 // pred_fallthru
      _
    // Predicated region
    $region6: #{tpu_custom_call.1} parent=1 // pred_check
      _
    $region7: #{tpu_custom_call.1} parent=1 // pred_check_branch
      %21 = sbr.rel (0) target = $region9
    $region8: #{tpu_custom_call.1} parent=1 // pred_region
      %s23 = ssub.s32 1024, 1024
      %24 = vsyncadd [#allocation6], %s23
      %s25 = sshll.u32 [#allocation5], 4
      %s26 = int_to_ptr.vmem [resolvable:$true] %s25
      %31 = dma.hbm_to_vmem [thread:$0]  %s1, 1024, %s26, [#allocation6], 128, 128, 8
    $region9: #{tpu_custom_call.1} parent=1 // pred_fallthru
      _
    // Predicated region
    $region10: #{tpu_custom_call.1} parent=1 // pred_check
      _
    $region11: #{tpu_custom_call.1} parent=1 // pred_check_branch
      %33 = sbr.rel (0) target = $region13
    $region12: #{tpu_custom_call.1} parent=1 // pred_region
      %34 = dma.done [#allocation3], 64
    $region13: #{tpu_custom_call.1} parent=1 // pred_fallthru
      _
    // Predicated region
    $region14: #{tpu_custom_call.1} parent=1 // pred_check
      _
    $region15: #{tpu_custom_call.1} parent=1 // pred_check_branch
      %36 = sbr.rel (0) target = $region17
    $region16: #{tpu_custom_call.1} parent=1 // pred_region
      %37 = dma.done [#allocation6], 1024
    $region17: #{tpu_custom_call.1} parent=1 // pred_fallthru
      _
    %v38 = vld [vmem:[#allocation2] sm:$0xf]
    %vm39 = vcmp.gt.s32.totalorder %v38, 0
    %v40 = vsel %vm39, %v38, 0
    %vm41 = vcmp.lt.s32.totalorder %v40, 15
    %v42 = vsel %vm41, %v40, 15
    %v43 = vlaneseq
    %v44 = vand.u32 %v43, 127
    %45 = vset.pattern.permute.xlu0 0
    %46 = vperm.xlu0 %45, %v42
    %v47 = vpop.permute.xlu0 %46
    %vm48 = vcmp.eq.s32.totalorder %v44, %v47
    %v49 = vadd.s32 %v42, 16
    %50 = vset.pattern.permute.xlu0 1
    %51 = vperm.xlu0 %50, %v49
    %v52 = vpop.permute.xlu0 %51
    %vm53 = vcmp.eq.s32.totalorder %v44, %v52
    %vm54 = vmor %vm48, %vm53
    %v55 = vadd.s32 %v42, 32
    %56 = vset.pattern.permute.xlu0 2
    %57 = vperm.xlu0 %56, %v55
    %v58 = vpop.permute.xlu0 %57
    %vm59 = vcmp.eq.s32.totalorder %v44, %v58
    %vm60 = vmor %vm54, %vm59
    %v61 = vadd.s32 %v42, 48
    %62 = vset.pattern.permute.xlu0 3
    %63 = vperm.xlu0 %62, %v61
    %v64 = vpop.permute.xlu0 %63
    %vm65 = vcmp.eq.s32.totalorder %v44, %v64
    %vm66 = vmor %vm60, %vm65
    %v67 = vsel %vm66, 1, 0
    %v68 = vcvt.s32.f32 %v67
    %v69 = vld [vmem:[#allocation5] sm:$0xff]
    %v70 = vld [vmem:[#allocation5 + $0x8] sm:$0xff]
    %v71 = vld [vmem:[#allocation5 + $0x10] sm:$0xff]
    %v72 = vld [vmem:[#allocation5 + $0x18] sm:$0xff]
    %v73 = vld [vmem:[#allocation5 + $0x20] sm:$0xff]
    %v74 = vld [vmem:[#allocation5 + $0x28] sm:$0xff]
    %v75 = vld [vmem:[#allocation5 + $0x30] sm:$0xff]
    %v76 = vld [vmem:[#allocation5 + $0x38] sm:$0xff]
    %vm77 = vcmask 523264
    %v79 = vsel %vm77, %v68, 0
    %81 = vmatprep.subr.mxu0 0.0
    %82 = vmatpush1.msra.mxu0 %v69
    %83 = vmatprep.subr.mxu0 0.0
    %84 = vmatpush1.msra.mxu0 %v70
    %85 = vmatprep.subr.mxu0 0.0
    %86 = vmatpush1.msra.mxu0 %v71
    %87 = vmatprep.subr.mxu0 0.0
    %88 = vmatpush1.msra.mxu0 %v72
    %89 = vmatprep.subr.mxu0 0.0
    %90 = vmatpush1.msra.mxu0 %v73
    %91 = vmatprep.subr.mxu0 0.0
    %92 = vmatpush1.msra.mxu0 %v74
    %93 = vmatprep.subr.mxu0 0.0
    %94 = vmatpush1.msra.mxu0 %v75
    %95 = vmatprep.subr.mxu0 0.0
    %96 = vmatpush1.msra.mxu0 %v76
    %97 = vmatprep.subr.mxu0 0.0
    %98 = vmatpush1.msra.mxu0 0.0
    %99 = vmatprep.subr.mxu0 0.0
    %100 = vmatpush1.msra.mxu0 0.0
    %101 = vmatprep.subr.mxu0 0.0
    %102 = vmatpush1.msra.mxu0 0.0
    %103 = vmatprep.subr.mxu0 0.0
    %104 = vmatpush1.msra.mxu0 0.0
    %105 = vmatprep.subr.mxu0 0.0
    %106 = vmatpush1.msra.mxu0 0.0
    %107 = vmatprep.subr.mxu0 0.0
    %108 = vmatpush1.msra.mxu0 0.0
    %109 = vmatprep.subr.mxu0 0.0
    %110 = vmatpush1.msra.mxu0 0.0
    %111 = vmatprep.subr.mxu0 0.0
    %112 = vmatpush1.msra.mxu0 0.0
    %113 = vmatprep.subr.mxu0 0.0
    %114 = vmatpush1.msra.mxu0 0.0
    %115 = vmatprep.subr.mxu0 0.0
    %116 = vmatpush1.msra.mxu0 0.0
    %117 = vmatprep.subr.mxu0 0.0
    %118 = vmatpush1.msra.mxu0 0.0
    %119 = vmatprep.subr.mxu0 0.0
    %120 = vmatpush1.msra.mxu0 0.0
    %121 = vmatprep.subr.mxu0 0.0
    %122 = vmatpush1.msra.mxu0 0.0
    %123 = vmatprep.subr.mxu0 0.0
    %124 = vmatpush1.msra.mxu0 0.0
    %125 = vmatprep.subr.mxu0 0.0
    %126 = vmatpush1.msra.mxu0 0.0
    %127 = vmatprep.subr.mxu0 0.0
    %128 = vmatpush1.msra.mxu0 0.0
    %129 = vmatprep.subr.mxu0 0.0
    %130 = vmatpush1.msra.mxu0 0.0
    %131 = vmatprep.subr.mxu0 0.0
    %132 = vmatpush1.msra.mxu0 0.0
    %133 = vmatprep.subr.mxu0 0.0
    %134 = vmatpush1.msra.mxu0 0.0
    %135 = vmatprep.subr.mxu0 0.0
    %136 = vmatpush1.msra.mxu0 0.0
    %137 = vmatprep.subr.mxu0 0.0
    %138 = vmatpush1.msra.mxu0 0.0
    %139 = vmatprep.subr.mxu0 0.0
    %140 = vmatpush1.msra.mxu0 0.0
    %141 = vmatprep.subr.mxu0 0.0
    %142 = vmatpush1.msra.mxu0 0.0
    %143 = vmatprep.subr.mxu0 0.0
    %144 = vmatpush1.msra.mxu0 0.0
    %145 = vmatprep.mubr.f32.mxu0 0.0
    %146 = vmatmul.mubr.f32.gmra.mrb[0].mxu0 %v79
    %v147 = vpop.f32.mrb[0].mxu0
    %v148 = vadd.f32 0.0, %v147
    %v149 = vpop.f32.mrb[0].mxu0
    %150 = vdwg.mxu0
    %151 = vst [vmem:[#allocation7] sm:$0xf] %v148
    // Predicated region
    $region18: #{tpu_custom_call.1} parent=1 // pred_check
      _
    $region19: #{tpu_custom_call.1} parent=1 // pred_check_branch
      %153 = sbr.rel (0) target = $region21
    $region20: #{tpu_custom_call.1} parent=1 // pred_region
      %s155 = ssub.s32 64, 64
      %156 = vsyncadd [#allocation4], %s155
      %s158 = sshll.u32 [#allocation7], 4
      %s159 = int_to_ptr.vmem [resolvable:$true] %s158
      %161 = dma.vmem_to_hbm [thread:$0]  %s159, 64, %s2, [#allocation4]
    $region21: #{tpu_custom_call.1} parent=1 // pred_fallthru
      _
    // Predicated region
    $region22: #{tpu_custom_call.1} parent=1 // pred_check
      _
    $region23: #{tpu_custom_call.1} parent=1 // pred_check_branch
      %163 = sbr.rel (0) target = $region25
    $region24: #{tpu_custom_call.1} parent=1 // pred_region
      %164 = dma.done [#allocation4], 64
    $region25: #{tpu_custom_call.1} parent=1 // pred_fallthru
      _
    %165 = vsyncpa [#allocation3], 1
    %166 = vsyncpa [#allocation6], 1
    %167 = vsyncpa [#allocation4], 1

</llo_original>
